<compile_context>
chip_gen: v6e
topology: v6e:2x2x1
jax: 0.10.0
libtpu: 0.0.40
codegen_flags: <defaults>
</compile_context>

<pallas_src>
import math

import jax
import jax.numpy as jnp
from jax.experimental import pallas as pl
from jax.experimental.pallas import tpu as pltpu

_LANE = 128


def _round_up(x, m):
    return ((x + m - 1) // m) * m


def _sublane(dtype):
    # Native sublane pack: 8 rows for 4-byte dtypes, 16 for 2-byte, 32 for 1-byte.
    return 8 * max(1, 4 // jnp.dtype(dtype).itemsize)


def _vmem_capacity_bytes():
    try:
        return int(pltpu.get_tpu_info().vmem_capacity_bytes)
    except Exception:
        return 64 * 1024 * 1024  # conservative (v7x-sized) fallback


def _fc_pe_kernel(x_ref, w1_ref, b1_ref, w2_ref, b2_ref, o_ref, h_ref):
    # x_ref : (tm, D_in)       w1_ref: (D_in, Hp)    b1_ref: (1, Hp) f32
    # w2_ref: (Hp, tn)         b2_ref: (1, tn) f32   o_ref : (tm, tn)
    # h_ref : (tm, Hp) VMEM scratch in the MXU operand dtype; recomputed once per
    #         row block (at column index 0) and reused across the column axis.
    @pl.when(pl.program_id(1) == 0)
    def _():
        x = x_ref[...]
        if x.dtype != w1_ref.dtype:  # static branch (trace time)
            x = x.astype(w1_ref.dtype)
        h = jnp.dot(x, w1_ref[...], preferred_element_type=jnp.float32)
        h = h + b1_ref[...]
        # cast-then-ReLU is bit-identical to ReLU-then-cast for max(., 0);
        # keeps the intermediate at MXU-operand width (bf16 on the fast path).
        h_ref[...] = jnp.maximum(h.astype(h_ref.dtype), 0)

    o = jnp.dot(h_ref[...], w2_ref[...], preferred_element_type=jnp.float32)
    o = o + b2_ref[...]
    o_ref[...] = jnp.maximum(o, 0.0).astype(o_ref.dtype)


def prepare_fc_pe_params(w1, b1, w2, b2, *, mxu_dtype=jnp.bfloat16):
    """One-time pad (hidden dim -> multiple of 128 lanes) + cast of the params.

    Returns (w1p, b1p, w2p, b2p, h_dim).  Feed the padded params to fc_with_pe
    (optionally with h_dim=<returned h_dim>) to avoid per-call pad/cast traffic.
    """
    h_dim = w1.shape[1]
    h_pad = _round_up(h_dim, _LANE)
    if h_pad != h_dim:
        w1 = jnp.pad(w1, ((0, 0), (0, h_pad - h_dim)))
        b1 = jnp.pad(b1, ((0, h_pad - h_dim),))
        w2 = jnp.pad(w2, ((0, h_pad - h_dim), (0, h_pad - h_dim)))
        b2 = jnp.pad(b2, ((0, h_pad - h_dim),))
    w_dtype = jnp.dtype(mxu_dtype) if mxu_dtype is not None else w1.dtype
    return (w1.astype(w_dtype), b1.astype(jnp.float32),
            w2.astype(w_dtype), b2.astype(jnp.float32), h_dim)


def fc_with_pe(x, w1, b1, w2, b2, *, h_dim=None, tm=None, mxu_dtype=jnp.bfloat16):
    """Fused forward of FC_with_PE: relu(relu(x @ w1 + b1) @ w2 + b2).

    x : (..., input_size)
    w1: (input_size, H[_pad]), b1: (H[_pad],)
    w2: (H[_pad], H[_pad]),    b2: (H[_pad],)
    h_dim: logical output width (defaults to w1.shape[1]); pass the original
           h_dim when using prepare_fc_pe_params and an unpadded result is needed.
    mxu_dtype: matmul operand dtype (default bf16; accumulation stays f32).
               Use jnp.float32 for a bit-exact path; None keeps w1.dtype.
    returns (..., h_dim)
    """
    orig_shape = x.shape
    d_in = orig_shape[-1]
    out_dtype = x.dtype
    h_in = w1.shape[1]
    h_out = h_dim if h_dim is not None else h_in

    x2d = x.reshape(-1, d_in)
    n = x2d.shape[0]

    # ---- lane-dense hidden/output dim (no-op when params were pre-padded).
    h_pad = _round_up(h_in, _LANE)
    if h_pad != h_in:
        w1 = jnp.pad(w1, ((0, 0), (0, h_pad - h_in)))
        b1 = jnp.pad(b1.reshape(-1), ((0, h_pad - h_in),))
        w2 = jnp.pad(w2, ((0, h_pad - h_in), (0, h_pad - h_in)))
        b2 = jnp.pad(b2.reshape(-1), ((0, h_pad - h_in),))

    w_dtype = jnp.dtype(mxu_dtype) if mxu_dtype is not None else jnp.dtype(w1.dtype)
    if w1.dtype != w_dtype:
        w1 = w1.astype(w_dtype)
    if w2.dtype != w_dtype:
        w2 = w2.astype(w_dtype)
    b1_2d = b1.reshape(1, h_pad)
    b2_2d = b2.reshape(1, h_pad)
    if b1_2d.dtype != jnp.float32:
        b1_2d = b1_2d.astype(jnp.float32)
    if b2_2d.dtype != jnp.float32:
        b2_2d = b2_2d.astype(jnp.float32)

    w_bytes = jnp.dtype(w_dtype).itemsize
    x_bytes = jnp.dtype(x.dtype).itemsize
    o_bytes = jnp.dtype(out_dtype).itemsize

    # ---- chip-aware VMEM budget (v5e/v6e: 128 MiB, v7x: 64 MiB per TC).
    vmem_cap = _vmem_capacity_bytes()
    budget = int(vmem_cap * 0.70)

    # ---- row tile: sublane-packed; aim for >= 4 row blocks when n allows so both
    # v7x TensorCores get work via the "parallel" row axis.
    sub = _sublane(x.dtype)
    if tm is None:
        tm = 1024 if vmem_cap >= 100 * 1024 * 1024 else 512
    tm = max(sub, (tm // sub) * sub)
    tm = min(tm, _round_up(n, sub))
    if n >= 4 * sub:
        tm = min(tm, _round_up(-(-n // 4), sub))

    # ---- W2 output-column tile (falls back to column tiling when HxH can't sit
    # resident in VMEM; tn == h_pad keeps W2 single-buffered & resident).
    tn = h_pad

    def vmem_bytes(tm_, tn_):
        w2_bufs = 1 if tn_ >= h_pad else 2
        weights = d_in * h_pad * w_bytes + h_pad * 4                    # W1 + b1 (resident)
        weights += w2_bufs * (h_pad * tn_ * w_bytes + tn_ * 4)          # W2 + b2 tiles
        io = 2 * tm_ * d_in * x_bytes + 2 * tm_ * tn_ * o_bytes         # x / out tiles
        scratch = tm_ * h_pad * w_bytes                                 # hidden scratch
        return weights + io + scratch

    while vmem_bytes(tm, tn) > budget and tn > 512:
        tn = max(512, _round_up(tn // 2, _LANE))
    while vmem_bytes(tm, tn) > budget and tm > sub:
        tm = max(sub, ((tm // 2) // sub) * sub)
    while vmem_bytes(tm, tn) > budget and tn > _LANE:
        tn = max(_LANE, _round_up(tn // 2, _LANE))

    vmem_limit = int(min(vmem_cap * 0.90,
                         max(24 * 1024 * 1024, vmem_bytes(tm, tn) * 1.3)))

    n_rows = pl.cdiv(n, tm)
    n_cols = pl.cdiv(h_pad, tn)
    grid = (n_rows, n_cols)

    flops = 2 * n * (d_in * h_pad + h_pad * h_pad)
    w2_reads = 1 if n_cols == 1 else n_rows   # W2 restreamed per row block if tiled
    bytes_accessed = int(n * d_in * x_bytes + n * h_pad * o_bytes
                         + d_in * h_pad * w_bytes + 2 * h_pad * 4
                         + w2_reads * h_pad * h_pad * w_bytes)

    resident = pl.Buffered(1)  # constant index_map -> single VMEM buffer
    w2_mode = pl.Buffered(1) if n_cols == 1 else pl.Buffered(2)

    out = pl.pallas_call(
        _fc_pe_kernel,
        out_shape=jax.ShapeDtypeStruct((n, h_pad), out_dtype),
        grid_spec=pltpu.PrefetchScalarGridSpec(
            num_scalar_prefetch=0,
            grid=grid,
            in_specs=[
                pl.BlockSpec((tm, d_in), lambda i, j: (i, 0)),                          # x rows
                pl.BlockSpec((d_in, h_pad), lambda i, j: (0, 0), pipeline_mode=resident),  # W1
                pl.BlockSpec((1, h_pad), lambda i, j: (0, 0), pipeline_mode=resident),     # b1
                pl.BlockSpec((h_pad, tn), lambda i, j: (0, j), pipeline_mode=w2_mode),     # W2 cols
                pl.BlockSpec((1, tn), lambda i, j: (0, j), pipeline_mode=w2_mode),         # b2 cols
            ],
            out_specs=pl.BlockSpec((tm, tn), lambda i, j: (i, j)),
            scratch_shapes=[pltpu.VMEM((tm, h_pad), w_dtype)],
        ),
        compiler_params=pltpu.CompilerParams(
            dimension_semantics=("parallel", "arbitrary"),
            vmem_limit_bytes=vmem_limit,
        ),
        cost_estimate=pl.CostEstimate(
            flops=flops, transcendentals=0, bytes_accessed=bytes_accessed),
    )(x2d, w1, b1_2d, w2, b2_2d)

    if h_pad != h_out:
        out = out[:, :h_out]
    return out.reshape(*orig_shape[:-1], h_out)


def init_params(key, input_size, h_dim):
    """Deterministic init mimicking torch.nn.Linear default (uniform +/- 1/sqrt(fan_in))."""
    k1, k2, k3, k4 = jax.random.split(key, 4)
    bound1 = 1.0 / math.sqrt(input_size)
    bound2 = 1.0 / math.sqrt(h_dim)
    w1 = jax.random.uniform(k1, (input_size, h_dim), jnp.float32, -bound1, bound1)
    b1 = jax.random.uniform(k2, (h_dim,), jnp.float32, -bound1, bound1)
    w2 = jax.random.uniform(k3, (h_dim, h_dim), jnp.float32, -bound2, bound2)
    b2 = jax.random.uniform(k4, (h_dim,), jnp.float32, -bound2, bound2)
    return w1, b1, w2, b2


def _reference(x, w1, b1, w2, b2):
    return jnp.maximum(jnp.maximum(x @ w1 + b1, 0.0) @ w2 + b2, 0.0)


if __name__ == "__main__":
    key = jax.random.PRNGKey(0)
    kx, kp, kr = jax.random.split(key, 3)

    batch, seq, input_size, h_dim = 2, 8, 32, 32
    x = jax.random.normal(kx, (batch, seq, input_size), jnp.float32)
    w1, b1, w2, b2 = init_params(kp, input_size, h_dim)
    ref = _reference(x, w1, b1, w2, b2)

    # Default path: bf16 MXU operands, f32 accumulation -> loose tolerance.
    out = jax.block_until_ready(fc_with_pe(x, w1, b1, w2, b2))
    assert out.shape == (batch, seq, h_dim)
    assert jnp.allclose(out, ref, atol=5e-2, rtol=5e-2)

    # Bit-exact f32 MXU path.
    out_f32 = jax.block_until_ready(fc_with_pe(x, w1, b1, w2, b2, mxu_dtype=jnp.float32))
    assert out_f32.shape == (batch, seq, h_dim)
    assert jnp.allclose(out_f32, ref, atol=1e-5, rtol=1e-5)

    # Pre-padded / pre-cast params (no per-call pad or cast traffic).
    w1p, b1p, w2p, b2p, hd = prepare_fc_pe_params(w1, b1, w2, b2)
    out_p = jax.block_until_ready(fc_with_pe(x, w1p, b1p, w2p, b2p, h_dim=hd))
    assert out_p.shape == (batch, seq, h_dim)
    assert jnp.allclose(out_p, ref, atol=5e-2, rtol=5e-2)

    # Ragged row count (n = 15 not a multiple of the tile) -> exercises the
    # in-kernel masking path (no host-side padding).
    xr = jax.random.normal(kr, (3, 5, input_size), jnp.float32)
    out_r = jax.block_until_ready(fc_with_pe(xr, w1, b1, w2, b2, mxu_dtype=jnp.float32))
    assert out_r.shape == (3, 5, h_dim)
    assert jnp.allclose(out_r, _reference(xr, w1, b1, w2, b2), atol=1e-5, rtol=1e-5)

    print("KERNEL_OK")
</pallas_src>

<mosaic_0001>
module attributes {stable_mosaic.version = 11 : i64} {
  func.func @_fc_pe_kernel(%arg0: i32, %arg1: i32, %arg2: memref<16x32xf32, #tpu.memory_space<vmem>>, %arg3: memref<32x128xbf16, #tpu.memory_space<vmem>>, %arg4: memref<1x128xf32, #tpu.memory_space<vmem>>, %arg5: memref<128x128xbf16, #tpu.memory_space<vmem>>, %arg6: memref<1x128xf32, #tpu.memory_space<vmem>>, %arg7: memref<16x128xf32, #tpu.memory_space<vmem>>, %arg8: memref<16x128xbf16, #tpu.memory_space<vmem>>) attributes {dimension_semantics = [#tpu.dimension_semantics<parallel>, #tpu.dimension_semantics<arbitrary>], iteration_bounds = array<i64: 1, 1>, scalar_prefetch = 0 : i64, scratch_operands = 1 : i64, tpu.core_type = #tpu.core_type<tc>, window_params = [{transform_indices = @transform_0, window_bounds = array<i64: 16, 32>}, {pipeline_mode = #tpu.pipeline_mode<synchronous>, transform_indices = @transform_1, window_bounds = array<i64: 32, 128>}, {pipeline_mode = #tpu.pipeline_mode<synchronous>, transform_indices = @transform_2, window_bounds = array<i64: 1, 128>}, {pipeline_mode = #tpu.pipeline_mode<synchronous>, transform_indices = @transform_3, window_bounds = array<i64: 128, 128>}, {pipeline_mode = #tpu.pipeline_mode<synchronous>, transform_indices = @transform_4, window_bounds = array<i64: 1, 128>}, {transform_indices = @transform_5, window_bounds = array<i64: 16, 128>}]} {
    %c0_i32 = arith.constant 0 : i32
    %0 = arith.cmpi eq, %arg1, %c0_i32 : i32
    %1 = arith.extui %0 : i1 to i32
    %c0_i32_0 = arith.constant 0 : i32
    %2 = arith.cmpi ne, %1, %c0_i32_0 : i32
    scf.if %2 {
      %c0_9 = arith.constant 0 : index
      %c0_10 = arith.constant 0 : index
      %12 = vector.load %arg2[%c0_9, %c0_10] : memref<16x32xf32, #tpu.memory_space<vmem>>, vector<16x32xf32>
      %13 = arith.truncf %12 : vector<16x32xf32> to vector<16x32xbf16>
      %c0_11 = arith.constant 0 : index
      %c0_12 = arith.constant 0 : index
      %14 = vector.load %arg3[%c0_11, %c0_12] : memref<32x128xbf16, #tpu.memory_space<vmem>>, vector<32x128xbf16>
      %cst_13 = arith.constant dense<0.000000e+00> : vector<16x128xf32>
      %15 = tpu.matmul %13, %14, %cst_13 {dimension_numbers = #tpu.dot_dimension_numbers<[1], [0], [0], [1], [0, 0, 1, 1], [], []>} : vector<16x32xbf16>, vector<32x128xbf16>, vector<16x128xf32> -> vector<16x128xf32>
      %c0_14 = arith.constant 0 : index
      %c0_15 = arith.constant 0 : index
      %16 = vector.load %arg4[%c0_14, %c0_15] : memref<1x128xf32, #tpu.memory_space<vmem>>, vector<1x128xf32>
      %17 = vector.broadcast %16 : vector<1x128xf32> to vector<16x128xf32>
      %18 = arith.addf %15, %17 : vector<16x128xf32>
      %19 = arith.truncf %18 : vector<16x128xf32> to vector<16x128xbf16>
      %cst_16 = arith.constant 0.000000e+00 : bf16
      %20 = vector.broadcast %cst_16 : bf16 to vector<16x128xbf16>
      %21 = arith.maximumf %19, %20 : vector<16x128xbf16>
      %c0_17 = arith.constant 0 : index
      %c0_18 = arith.constant 0 : index
      %22 = vector.load %arg8[%c0_17, %c0_18] : memref<16x128xbf16, #tpu.memory_space<vmem>>, vector<16x128xbf16>
      tpu.vector_store %arg8[%c0_17, %c0_18], %21 {strides = array<i32>} : memref<16x128xbf16, #tpu.memory_space<vmem>>, vector<16x128xbf16>,
    } else {
    }
    %c0 = arith.constant 0 : index
    %c0_1 = arith.constant 0 : index
    %3 = vector.load %arg8[%c0, %c0_1] : memref<16x128xbf16, #tpu.memory_space<vmem>>, vector<16x128xbf16>
    %c0_2 = arith.constant 0 : index
    %c0_3 = arith.constant 0 : index
    %4 = vector.load %arg5[%c0_2, %c0_3] : memref<128x128xbf16, #tpu.memory_space<vmem>>, vector<128x128xbf16>
    %cst = arith.constant dense<0.000000e+00> : vector<16x128xf32>
    %5 = tpu.matmul %3, %4, %cst {dimension_numbers = #tpu.dot_dimension_numbers<[1], [0], [0], [1], [0, 0, 1, 1], [], []>} : vector<16x128xbf16>, vector<128x128xbf16>, vector<16x128xf32> -> vector<16x128xf32>
    %c0_4 = arith.constant 0 : index
    %c0_5 = arith.constant 0 : index
    %6 = vector.load %arg6[%c0_4, %c0_5] : memref<1x128xf32, #tpu.memory_space<vmem>>, vector<1x128xf32>
    %7 = vector.broadcast %6 : vector<1x128xf32> to vector<16x128xf32>
    %8 = arith.addf %5, %7 : vector<16x128xf32>
    %cst_6 = arith.constant 0.000000e+00 : f32
    %9 = vector.broadcast %cst_6 : f32 to vector<16x128xf32>
    %10 = arith.maximumf %8, %9 : vector<16x128xf32>
    %c0_7 = arith.constant 0 : index
    %c0_8 = arith.constant 0 : index
    %11 = vector.load %arg7[%c0_7, %c0_8] : memref<16x128xf32, #tpu.memory_space<vmem>>, vector<16x128xf32>
    tpu.vector_store %arg7[%c0_7, %c0_8], %10 {strides = array<i32>} : memref<16x128xf32, #tpu.memory_space<vmem>>, vector<16x128xf32>,
    return
  }
  func.func @transform_0(%arg0: i32, %arg1: i32) -> (i32, i32) {
    %c0_i32 = arith.constant 0 : i32
    %c0_i32_0 = arith.constant 0 : i32
    return %arg0, %c0_i32 : i32, i32
  }
  func.func @transform_1(%arg0: i32, %arg1: i32) -> (i32, i32) {
    %c0_i32 = arith.constant 0 : i32
    %c0_i32_0 = arith.constant 0 : i32
    %c0_i32_1 = arith.constant 0 : i32
    return %c0_i32, %c0_i32_0 : i32, i32
  }
  func.func @transform_2(%arg0: i32, %arg1: i32) -> (i32, i32) {
    %c0_i32 = arith.constant 0 : i32
    %c0_i32_0 = arith.constant 0 : i32
    %c0_i32_1 = arith.constant 0 : i32
    return %c0_i32, %c0_i32_0 : i32, i32
  }
  func.func @transform_3(%arg0: i32, %arg1: i32) -> (i32, i32) {
    %c0_i32 = arith.constant 0 : i32
    %c0_i32_0 = arith.constant 0 : i32
    return %c0_i32, %arg1 : i32, i32
  }
  func.func @transform_4(%arg0: i32, %arg1: i32) -> (i32, i32) {
    %c0_i32 = arith.constant 0 : i32
    %c0_i32_0 = arith.constant 0 : i32
    return %c0_i32, %arg1 : i32, i32
  }
  func.func @transform_5(%arg0: i32, %arg1: i32) -> (i32, i32) {
    %c0_i32 = arith.constant 0 : i32
    return %arg0, %arg1 : i32, i32
  }
}

</mosaic_0001>

<llo_original>
// kernel: tpu_custom_call.1
$region0: #{tpu_custom_call.1}
  #allocation0 [shape = 'u32[]', space=smem, size = 0x4, offset = 0x4, fixed_abs, tag = 'smem constant byte address 0x4 - core index']
  #allocation1 [shape = 'u32[144,128]{1,0:T(1,128)}', space=vmem, size = 0x12000, scoped, tag = 'internal scratch']
  #allocation2 [shape = 'bf16[16,128]{1,0:T(8,128)(2,1)}', space=vmem, size = 0x1000, scoped, tag = 'scratch operand']
  %s0 = inlined_call_operand.hbm [shape: f32[16,32], index: 0, kind: input, shape index: {}]
  %s1 = inlined_call_operand.hbm [shape: bf16[32,128], index: 1, kind: input, shape index: {}]
  %s2 = inlined_call_operand.vmem [shape: f32[1,128], index: 2, kind: input, shape index: {}]
  %s3 = inlined_call_operand.hbm [shape: bf16[128,128], index: 3, kind: input, shape index: {}]
  %s4 = inlined_call_operand.vmem [shape: f32[1,128], index: 4, kind: input, shape index: {}]
  %s5 = inlined_call_operand.hbm [shape: f32[16,128], index: 5, kind: output, shape index: {}]
  %s6 = sld [smem:[#allocation0]]
  $region46: #{tpu_custom_call.1} parent=0
    _
  %s8 = ssub.s32 1, %s6
  %s9 = scalar_select 0, %s8, %s6
  $region1: #{tpu_custom_call.1} parent=0
    #allocation3 [shape = 'u8[8192]{0}', space=vmem, size = 0x2000, scoped, tag = 'input window, operand 0, single buffered']
    #allocation4 [shape = 's32[1]{0}', space=sflag, size = 0x4, scoped, tag = 'scoped memory for tpu_custom_call.1']
    #allocation5 [shape = 's32[1]{0}', space=sflag, size = 0x4, scoped, tag = 'scoped memory for tpu_custom_call.1']
    #allocation6 [shape = 'u8[8192]{0}', space=vmem, size = 0x2000, scoped, tag = 'input window, operand 1, single buffered']
    #allocation7 [shape = 's32[1]{0}', space=sflag, size = 0x4, scoped, tag = 'scoped memory for tpu_custom_call.1']
    #allocation8 [shape = 'u8[32768]{0}', space=vmem, size = 0x8000, scoped, tag = 'input window, operand 3, single buffered']
    #allocation9 [shape = 'u8[8192]{0}', space=vmem, size = 0x2000, scoped, tag = 'output window, operand 0, single buffered']
    %10 = vsyncpa [#allocation4], 0
    %11 = vsyncpa [#allocation7], 0
    %12 = vsyncpa [#allocation5], 0
    // Predicated region
    $region2: #{tpu_custom_call.1} parent=1 // pred_check
      _
    $region3: #{tpu_custom_call.1} parent=1 // pred_check_branch
      %14 = sbr.rel (0) target = $region5
    $region4: #{tpu_custom_call.1} parent=1 // pred_region
      %s16 = ssub.s32 256, 256
      %17 = vsyncadd [#allocation4], %s16
      %s18 = sshll.u32 [#allocation3], 4
      %s19 = int_to_ptr.vmem [resolvable:$true] %s18
      %24 = dma.hbm_to_vmem [thread:$0]  %s0, 256, %s19, [#allocation4], 128, 128, 8
    $region5: #{tpu_custom_call.1} parent=1 // pred_fallthru
      _
    // Predicated region
    $region6: #{tpu_custom_call.1} parent=1 // pred_check
      _
    $region7: #{tpu_custom_call.1} parent=1 // pred_check_branch
      %26 = sbr.rel (0) target = $region9
    $region8: #{tpu_custom_call.1} parent=1 // pred_region
      %s28 = ssub.s32 256, 256
      %29 = vsyncadd [#allocation7], %s28
      %s30 = sshll.u32 [#allocation6], 4
      %s31 = int_to_ptr.vmem [resolvable:$true] %s30
      %36 = dma.hbm_to_vmem [thread:$0]  %s1, 256, %s31, [#allocation7], 64, 64, 4
    $region9: #{tpu_custom_call.1} parent=1 // pred_fallthru
      _
    // Predicated region
    $region10: #{tpu_custom_call.1} parent=1 // pred_check
      _
    $region11: #{tpu_custom_call.1} parent=1 // pred_check_branch
      %38 = sbr.rel (0) target = $region13
    $region12: #{tpu_custom_call.1} parent=1 // pred_region
      _
    $region13: #{tpu_custom_call.1} parent=1 // pred_fallthru
      _
    // Predicated region
    $region14: #{tpu_custom_call.1} parent=1 // pred_check
      _
    $region15: #{tpu_custom_call.1} parent=1 // pred_check_branch
      %40 = sbr.rel (0) target = $region17
    $region16: #{tpu_custom_call.1} parent=1 // pred_region
      %s42 = ssub.s32 1024, 1024
      %43 = vsyncadd [#allocation7], %s42
      %s44 = sshll.u32 [#allocation8], 4
      %s45 = int_to_ptr.vmem [resolvable:$true] %s44
      %50 = dma.hbm_to_vmem [thread:$0]  %s3, 1024, %s45, [#allocation7], 64, 64, 4
    $region17: #{tpu_custom_call.1} parent=1 // pred_fallthru
      _
    // Predicated region
    $region18: #{tpu_custom_call.1} parent=1 // pred_check
      _
    $region19: #{tpu_custom_call.1} parent=1 // pred_check_branch
      %52 = sbr.rel (0) target = $region21
    $region20: #{tpu_custom_call.1} parent=1 // pred_region
      _
    $region21: #{tpu_custom_call.1} parent=1 // pred_fallthru
      _
    // Predicated region
    $region22: #{tpu_custom_call.1} parent=1 // pred_check
      _
    $region23: #{tpu_custom_call.1} parent=1 // pred_check_branch
      %54 = sbr.rel (0) target = $region25
    $region24: #{tpu_custom_call.1} parent=1 // pred_region
      %55 = dma.done [#allocation4], 256
    $region25: #{tpu_custom_call.1} parent=1 // pred_fallthru
      _
    // Predicated region
    $region26: #{tpu_custom_call.1} parent=1 // pred_check
      _
    $region27: #{tpu_custom_call.1} parent=1 // pred_check_branch
      %57 = sbr.rel (0) target = $region29
    $region28: #{tpu_custom_call.1} parent=1 // pred_region
      %58 = dma.done [#allocation7], 256
    $region29: #{tpu_custom_call.1} parent=1 // pred_fallthru
      _
    // Predicated region
    $region30: #{tpu_custom_call.1} parent=1 // pred_check
      _
    $region31: #{tpu_custom_call.1} parent=1 // pred_check_branch
      %60 = sbr.rel (0) target = $region33
    $region32: #{tpu_custom_call.1} parent=1 // pred_region
      %61 = dma.done [#allocation7], 1024
    $region33: #{tpu_custom_call.1} parent=1 // pred_fallthru
      _
    %p63 = scmp.eq.s32.totalorder 0, 0
    // Predicated region
    $region34: #{tpu_custom_call.1} parent=1 // pred_check
      %p64 = pneg %p63
    $region35: #{tpu_custom_call.1} parent=1 // pred_check_branch
      %66 = sbr.rel (%p64) target = $region37
    $region36: #{tpu_custom_call.1} parent=1 // pred_region
      %v67 = vld [vmem:[#allocation3] sm:$0xff]
      %v68 = vld [vmem:[#allocation3 + $0x8] sm:$0xff]
      %v69 = vpack.c.bf16 %v68, %v67
      %v70 = vld [vmem:[#allocation6] sm:$0xf]
      %v71 = vld [vmem:[#allocation6 + $0x4] sm:$0xf]
      %v72 = vld [vmem:[#allocation6 + $0x8] sm:$0xf]
      %v73 = vld [vmem:[#allocation6 + $0xc] sm:$0xf]
      %v74 = vld [vmem:[%s2] sm:$0x1]
      %v76 = vlaneseq
      %v77 = vshrl.u32 %v76, 7
      %v78 = vsub.s32 0, %v77
      %v79 = vrot.slane %v74, %v78
      %v85 = vunpack.c.l.b16 %v70
      %v86 = vunpack.c.l.b16 %v71
      %v87 = vunpack.c.l.b16 %v72
      %v88 = vunpack.c.l.b16 %v73
      %v89 = vpack.c.b16 %v86, %v85
      %v90 = vpack.c.b16 %v88, %v87
      %vm93 = vcmask 261120
      %v95 = vsel %vm93, %v69, 0
      %97 = vmatprep.subr.bf16.mxu0 0
      %98 = vmatpush1.bf16.msra.mxu0 0
      %99 = vmatprep.subr.bf16.mxu0 0
      %100 = vmatpush1.bf16.msra.mxu0 0
      %101 = vmatprep.subr.bf16.mxu0 0
      %102 = vmatpush1.bf16.msra.mxu0 0
      %103 = vmatprep.subr.bf16.mxu0 0
      %104 = vmatpush1.bf16.msra.mxu0 0
      %105 = vmatprep.subr.bf16.mxu0 0
      %106 = vmatpush1.bf16.msra.mxu0 0
      %107 = vmatprep.subr.bf16.mxu0 0
      %108 = vmatpush1.bf16.msra.mxu0 0
      %109 = vmatprep.subr.bf16.mxu0 0
      %110 = vmatpush1.bf16.msra.mxu0 %v90
      %111 = vmatprep.subr.bf16.mxu0 0
      %112 = vmatpush1.bf16.msra.mxu0 %v89
      %113 = vmatprep.subr.bf16.mxu0 0
      %114 = vmatpush2.bf16.msra.mxu0 0
      %115 = vmatprep.subr.bf16.mxu0 0
      %116 = vmatpush2.bf16.msra.mxu0 0
      %117 = vmatprep.subr.bf16.mxu0 0
      %118 = vmatpush2.bf16.msra.mxu0 0
      %119 = vmatprep.subr.bf16.mxu0 0
      %120 = vmatpush2.bf16.msra.mxu0 0
      %121 = vmatprep.subr.bf16.mxu0 0
      %122 = vmatpush2.bf16.msra.mxu0 0
      %123 = vmatprep.subr.bf16.mxu0 0
      %124 = vmatpush2.bf16.msra.mxu0 0
      %125 = vmatprep.subr.bf16.mxu0 0
      %126 = vmatpush2.bf16.msra.mxu0 0
      %127 = vmatprep.subr.bf16.mxu0 0
      %128 = vmatpush2.bf16.msra.mxu0 0
      %129 = vmatprep.mubr.bf16.mxu0 0
      %130 = vmatmul.mubr.bf16.gmra.mxu0 %v95
      %v131 = vpop.f32.mrf.mxu0
      %v132 = vadd.f32 %v79, %v131
      %v133 = vpop.f32.mrf.mxu0
      %v134 = vpop.f32.mrf.mxu0
      %v135 = vadd.f32 %v79, %v134
      %v136 = vpop.f32.mrf.mxu0
      %137 = vdwg.mxu0
      %v138 = vpack.c.bf16 %v135, %v132
      %v139 = vmax.bf16 %v138, 0
      %v141 = vunpack.c.l.b16 %v139
      %v142 = vunpack.c.h.b16 %v139
      %v143 = vpack.c.b16 %v141, %v141
      %v144 = vpack.c.b16 %v142, %v142
      %147 = vst [vmem:[#allocation2] sm:$0xf] %v143
      %148 = vst [vmem:[#allocation2 + $0x4] sm:$0xf] %v144
    $region37: #{tpu_custom_call.1} parent=1 // pred_fallthru
      _
    %v149 = vld [vmem:[#allocation2] sm:$0xf]
    %v150 = vld [vmem:[#allocation2 + $0x4] sm:$0xf]
    %v151 = vld [vmem:[#allocation8] sm:$0xf]
    %v152 = vld [vmem:[#allocation8 + $0x4] sm:$0xf]
    %v153 = vld [vmem:[#allocation8 + $0x8] sm:$0xf]
    %v154 = vld [vmem:[#allocation8 + $0xc] sm:$0xf]
    %v155 = vld [vmem:[#allocation8 + $0x10] sm:$0xf]
    %v156 = vld [vmem:[#allocation8 + $0x14] sm:$0xf]
    %v157 = vld [vmem:[#allocation8 + $0x18] sm:$0xf]
    %v158 = vld [vmem:[#allocation8 + $0x1c] sm:$0xf]
    %v159 = vld [vmem:[#allocation8 + $0x20] sm:$0xf]
    %v160 = vld [vmem:[#allocation8 + $0x24] sm:$0xf]
    %v161 = vld [vmem:[#allocation8 + $0x28] sm:$0xf]
    %v162 = vld [vmem:[#allocation8 + $0x2c] sm:$0xf]
    %v163 = vld [vmem:[#allocation8 + $0x30] sm:$0xf]
    %v164 = vld [vmem:[#allocation8 + $0x34] sm:$0xf]
    %v165 = vld [vmem:[#allocation8 + $0x38] sm:$0xf]
    %v166 = vld [vmem:[#allocation8 + $0x3c] sm:$0xf]
    %v167 = vld [vmem:[%s4] sm:$0x1]
    %v169 = vlaneseq
    %v170 = vshrl.u32 %v169, 7
    %v171 = vsub.s32 0, %v170
    %v172 = vrot.slane %v167, %v171
    %v176 = vunpack.c.l.b16 %v149
    %v177 = vunpack.c.l.b16 %v150
    %v178 = vpack.c.b16 %v177, %v176
    %v196 = vunpack.c.l.b16 %v151
    %v197 = vunpack.c.l.b16 %v152
    %v198 = vunpack.c.l.b16 %v153
    %v199 = vunpack.c.l.b16 %v154
    %v200 = vunpack.c.l.b16 %v155
    %v201 = vunpack.c.l.b16 %v156
    %v202 = vunpack.c.l.b16 %v157
    %v203 = vunpack.c.l.b16 %v158
    %v204 = vunpack.c.l.b16 %v159
    %v205 = vunpack.c.l.b16 %v160
    %v206 = vunpack.c.l.b16 %v161
    %v207 = vunpack.c.l.b16 %v162
    %v208 = vunpack.c.l.b16 %v163
    %v209 = vunpack.c.l.b16 %v164
    %v210 = vunpack.c.l.b16 %v165
    %v211 = vunpack.c.l.b16 %v166
    %v212 = vpack.c.b16 %v197, %v196
    %v213 = vpack.c.b16 %v199, %v198
    %v214 = vpack.c.b16 %v201, %v200
    %v215 = vpack.c.b16 %v203, %v202
    %v216 = vpack.c.b16 %v205, %v204
    %v217 = vpack.c.b16 %v207, %v206
    %v218 = vpack.c.b16 %v209, %v208
    %v219 = vpack.c.b16 %v211, %v210
    %228 = vmatprep.subr.bf16.mxu0 0
    %229 = vmatpush1.bf16.msra.mxu0 %v219
    %230 = vmatprep.subr.bf16.mxu0 0
    %231 = vmatpush1.bf16.msra.mxu0 %v218
    %232 = vmatprep.subr.bf16.mxu0 0
    %233 = vmatpush1.bf16.msra.mxu0 %v217
    %234 = vmatprep.subr.bf16.mxu0 0
    %235 = vmatpush1.bf16.msra.mxu0 %v216
    %236 = vmatprep.subr.bf16.mxu0 0
    %237 = vmatpush1.bf16.msra.mxu0 %v215
    %238 = vmatprep.subr.bf16.mxu0 0
    %239 = vmatpush1.bf16.msra.mxu0 %v214
    %240 = vmatprep.subr.bf16.mxu0 0
    %241 = vmatpush1.bf16.msra.mxu0 %v213
    %242 = vmatprep.subr.bf16.mxu0 0
    %243 = vmatpush1.bf16.msra.mxu0 %v212
    %244 = vmatprep.subr.bf16.mxu0 0
    %245 = vmatpush2.bf16.msra.mxu0 0
    %246 = vmatprep.subr.bf16.mxu0 0
    %247 = vmatpush2.bf16.msra.mxu0 0
    %248 = vmatprep.subr.bf16.mxu0 0
    %249 = vmatpush2.bf16.msra.mxu0 0
    %250 = vmatprep.subr.bf16.mxu0 0
    %251 = vmatpush2.bf16.msra.mxu0 0
    %252 = vmatprep.subr.bf16.mxu0 0
    %253 = vmatpush2.bf16.msra.mxu0 0
    %254 = vmatprep.subr.bf16.mxu0 0
    %255 = vmatpush2.bf16.msra.mxu0 0
    %256 = vmatprep.subr.bf16.mxu0 0
    %257 = vmatpush2.bf16.msra.mxu0 0
    %258 = vmatprep.subr.bf16.mxu0 0
    %259 = vmatpush2.bf16.msra.mxu0 0
    %260 = vmatprep.mubr.bf16.mxu0 0
    %261 = vmatmul.mubr.bf16.gmra.mxu0 %v178
    %v262 = vpop.f32.mrf.mxu0
    %v263 = vadd.f32 %v172, %v262
    %v264 = vpop.f32.mrf.mxu0
    %v265 = vpop.f32.mrf.mxu0
    %v266 = vadd.f32 %v172, %v265
    %v267 = vpop.f32.mrf.mxu0
    %268 = vdwg.mxu0
    %v269 = vmax.f32 %v263, 0.0
    %v270 = vmax.f32 %v266, 0.0
    %271 = vst [vmem:[#allocation9] sm:$0xff] %v269
    %272 = vst [vmem:[#allocation9 + $0x8] sm:$0xff] %v270
    // Predicated region
    $region38: #{tpu_custom_call.1} parent=1 // pred_check
      _
    $region39: #{tpu_custom_call.1} parent=1 // pred_check_branch
      %274 = sbr.rel (0) target = $region41
    $region40: #{tpu_custom_call.1} parent=1 // pred_region
      %s276 = ssub.s32 256, 256
      %277 = vsyncadd [#allocation5], %s276
      %s278 = sshll.u32 [#allocation9], 4
      %s279 = int_to_ptr.vmem [resolvable:$true] %s278
      %284 = dma.vmem_to_hbm [thread:$0]  %s279, 256, %s5, [#allocation5], 128, 128, 8
    $region41: #{tpu_custom_call.1} parent=1 // pred_fallthru
      _
    // Predicated region
    $region42: #{tpu_custom_call.1} parent=1 // pred_check
      _
    $region43: #{tpu_custom_call.1} parent=1 // pred_check_branch
      %286 = sbr.rel (0) target = $region45
    $region44: #{tpu_custom_call.1} parent=1 // pred_region
      %287 = dma.done [#allocation5], 256
    $region45: #{tpu_custom_call.1} parent=1 // pred_fallthru
      _
    %288 = vsyncpa [#allocation4], 1
    %289 = vsyncpa [#allocation7], 1
    %290 = vsyncpa [#allocation5], 1

</llo_original>
